<compile_context>
chip_gen: v6e
topology: v6e:2x2x1
jax: 0.10.0
libtpu: 0.0.40
codegen_flags: <defaults>
</compile_context>

<pallas_src>
import math

import jax
import jax.numpy as jnp
from jax.experimental import pallas as pl
from jax.experimental.pallas import tpu as pltpu


def _drop_path_kernel(x_ref, scale_ref, out_ref):
    """x_ref/out_ref: (b_blk, f_blk); scale_ref: (b_blk, 1). One VPU multiply."""
    out_ref[...] = x_ref[...] * scale_ref[...]


def _round_up(n, m):
    return ((n + m - 1) // m) * m


def drop_path(x, drop_prob=0.0, *, training=False, scale_by_keep=True,
              rng_key=None):
    """Stochastic depth per sample.  x: (B, ...) with arbitrary trailing shape."""
    if drop_prob is None:
        drop_prob = 0.0
    if drop_prob == 0.0 or not training:
        return x  # identity, exactly like the PyTorch forward
    if rng_key is None:
        raise ValueError("rng_key is required when training with drop_prob > 0")

    keep_prob = 1.0 - drop_prob
    orig_shape = x.shape
    B = x.shape[0]
    F = int(math.prod(x.shape[1:])) if x.ndim > 1 else 1

    # Per-sample Bernoulli keep mask; scale computed in float32, cast once.
    # TODO(synk): RNG is drawn host-side with jax.random (not the in-kernel TPU
    # PRNG); values differ from torch.rand but the stochastic-depth semantics
    # (Bernoulli(keep_prob) per sample, 1/keep_prob rescale) are identical.
    keep = jax.random.bernoulli(rng_key, p=keep_prob, shape=(B,)).astype(jnp.float32)
    if scale_by_keep and keep_prob > 0.0:   # guard drop_prob == 1.0 -> no 0/0 NaN
        scale = keep / jnp.float32(keep_prob)
    else:
        scale = keep
    scale = scale.astype(x.dtype)

    itemsize = jnp.dtype(x.dtype).itemsize
    rows_per_vreg = max(8, 32 // itemsize)  # 8 for f32, 16 for bf16, 32 for int8/fp8

    # Densify small batches: free row-major reshape (B, F) -> (B*k, F//k) fills
    # the sublane axis; only taken when the split keeps the last dim a multiple
    # of 128.  The per-sample scale is repeated k times to match.
    k = 1
    while (B * k < rows_per_vreg
           and F % (2 * k) == 0
           and (F // (2 * k)) % 128 == 0):
        k *= 2
    R, Fr = B * k, F // k

    xf = x.reshape(R, Fr)
    scale_rows = jnp.repeat(scale, k).reshape(R, 1)

    # Tiling: lane block = big multiple of 128 (capped), sublane block = multiple
    # of the dtype's packed vreg row count, targeting ~2 MiB per block so the
    # double-buffered pipeline fits v5e's 16 MiB default scoped VMEM with room.
    target_block_bytes = 2 * 1024 * 1024
    f_blk = min(32 * 1024, _round_up(Fr, 128))
    rows_for_target = max(
        rows_per_vreg,
        (target_block_bytes // (f_blk * itemsize)) // rows_per_vreg * rows_per_vreg)
    b_blk = min(rows_for_target, _round_up(R, rows_per_vreg))

    grid = (pl.cdiv(R, b_blk), pl.cdiv(Fr, f_blk))
    bytes_accessed = 2 * R * Fr * itemsize + R * itemsize

    # NOTE: input_output_aliases={0: 0} would allow buffer donation of xf, but
    # it forces a copy when the caller has not donated x, so it is left off.
    out = pl.pallas_call(
        _drop_path_kernel,
        out_shape=jax.ShapeDtypeStruct((R, Fr), x.dtype),
        grid=grid,
        in_specs=[
            pl.BlockSpec((b_blk, f_blk), lambda i, j: (i, j)),
            # Scale block index is constant across the inner (lane) grid axis,
            # so its tiny DMA is not re-issued on every inner step.
            pl.BlockSpec((b_blk, 1), lambda i, j: (i, 0)),
        ],
        out_specs=pl.BlockSpec((b_blk, f_blk), lambda i, j: (i, j)),
        compiler_params=pltpu.CompilerParams(
            dimension_semantics=("parallel", "parallel"),
            vmem_limit_bytes=32 * 1024 * 1024),
        cost_estimate=pl.CostEstimate(
            flops=R * Fr, transcendentals=0, bytes_accessed=bytes_accessed),
    )(xf, scale_rows)
    return out.reshape(orig_shape)


class SegformerDropPath:
    """Drop paths (Stochastic Depth) per sample, mirroring the nn.Module."""

    def __init__(self, drop_prob=None):
        self.drop_prob = drop_prob
        self.training = False

    def __call__(self, x, rng_key=None):
        return drop_path(x, self.drop_prob, training=self.training,
                         rng_key=rng_key)


if __name__ == "__main__":
    key = jax.random.PRNGKey(0)
    k_x, k_mask, k_x2, k_mask2, k_x3, k_mask3 = jax.random.split(key, 6)

    drop_prob = 0.25
    keep_prob = 1.0 - drop_prob

    # SegFormer hidden states: (batch, seq_len, hidden) -- small demo shapes.
    B, S, C = 2, 8, 32
    x = jax.random.normal(k_x, (B, S, C), jnp.float32)

    module = SegformerDropPath(drop_prob)

    # --- eval mode: identity ---
    module.training = False
    out_eval = jax.block_until_ready(module(x))
    assert jnp.array_equal(out_eval, x), "eval-mode drop_path must be identity"

    # --- training mode: per-sample mask + 1/keep_prob rescale (Pallas kernel) ---
    module.training = True
    out_train = jax.block_until_ready(module(x, rng_key=k_mask))
    keep_ref = jax.random.bernoulli(k_mask, p=keep_prob, shape=(B,)).astype(jnp.float32)
    ref = x * (keep_ref / keep_prob)[:, None, None]
    assert out_train.shape == x.shape
    assert jnp.allclose(out_train, ref, atol=1e-6, rtol=1e-6), \
        f"max abs err {jnp.max(jnp.abs(out_train - ref))}"

    # --- bf16 path: exercises dtype-aware sublane blocking + small-B densify ---
    x3 = jax.random.normal(k_x3, (2, 64, 256)).astype(jnp.bfloat16)
    out3 = jax.block_until_ready(
        drop_path(x3, drop_prob, training=True, rng_key=k_mask3))
    keep3 = jax.random.bernoulli(k_mask3, p=keep_prob, shape=(2,)).astype(jnp.float32)
    scale3 = (keep3 / keep_prob).astype(jnp.bfloat16)
    ref3 = x3 * scale3[:, None, None]
    assert jnp.allclose(out3.astype(jnp.float32), ref3.astype(jnp.float32),
                        atol=1e-2, rtol=1e-2)

    # --- ragged trailing shape (last dim not a multiple of 128): handled by the
    #     cdiv grid + boundary padding, no full-extent block / no host pad ---
    B2 = 4
    x2 = jax.random.normal(k_x2, (B2, 7, 5), jnp.float32)
    out2 = jax.block_until_ready(
        drop_path(x2, drop_prob, training=True, rng_key=k_mask2))
    keep2 = jax.random.bernoulli(k_mask2, p=keep_prob, shape=(B2,)).astype(jnp.float32)
    ref2 = x2 * (keep2 / keep_prob)[:, None, None]
    assert jnp.allclose(out2, ref2, atol=1e-6, rtol=1e-6)

    print("KERNEL_OK")
</pallas_src>

<mosaic_0001>
module attributes {stable_mosaic.version = 11 : i64} {
  func.func @_drop_path_kernel(%arg0: i32, %arg1: i32, %arg2: memref<8x128xf32, #tpu.memory_space<vmem>>, %arg3: memref<8x1xf32, #tpu.memory_space<vmem>>, %arg4: memref<8x128xf32, #tpu.memory_space<vmem>>) attributes {dimension_semantics = [#tpu.dimension_semantics<parallel>, #tpu.dimension_semantics<parallel>], iteration_bounds = array<i64: 1, 1>, scalar_prefetch = 0 : i64, scratch_operands = 0 : i64, tpu.core_type = #tpu.core_type<tc>, window_params = [{transform_indices = @transform_0, window_bounds = array<i64: 8, 128>}, {transform_indices = @transform_1, window_bounds = array<i64: 8, 1>}, {transform_indices = @transform_2, window_bounds = array<i64: 8, 128>}]} {
    %c0 = arith.constant 0 : index
    %c0_0 = arith.constant 0 : index
    %0 = vector.load %arg2[%c0, %c0_0] : memref<8x128xf32, #tpu.memory_space<vmem>>, vector<8x128xf32>
    %c0_1 = arith.constant 0 : index
    %c0_2 = arith.constant 0 : index
    %1 = vector.load %arg3[%c0_1, %c0_2] : memref<8x1xf32, #tpu.memory_space<vmem>>, vector<8x1xf32>
    %2 = vector.broadcast %1 : vector<8x1xf32> to vector<8x128xf32>
    %3 = arith.mulf %0, %2 : vector<8x128xf32>
    %c0_3 = arith.constant 0 : index
    %c0_4 = arith.constant 0 : index
    %4 = vector.load %arg4[%c0_3, %c0_4] : memref<8x128xf32, #tpu.memory_space<vmem>>, vector<8x128xf32>
    tpu.vector_store %arg4[%c0_3, %c0_4], %3 {strides = array<i32>} : memref<8x128xf32, #tpu.memory_space<vmem>>, vector<8x128xf32>,
    return
  }
  func.func @transform_0(%arg0: i32, %arg1: i32) -> (i32, i32) {
    %c0_i32 = arith.constant 0 : i32
    return %arg0, %arg1 : i32, i32
  }
  func.func @transform_1(%arg0: i32, %arg1: i32) -> (i32, i32) {
    %c0_i32 = arith.constant 0 : i32
    %c0_i32_0 = arith.constant 0 : i32
    return %arg0, %c0_i32 : i32, i32
  }
  func.func @transform_2(%arg0: i32, %arg1: i32) -> (i32, i32) {
    %c0_i32 = arith.constant 0 : i32
    return %arg0, %arg1 : i32, i32
  }
}

</mosaic_0001>

<llo_original>
// kernel: tpu_custom_call.1
$region0: #{tpu_custom_call.1}
  #allocation0 [shape = 'u32[]', space=smem, size = 0x4, offset = 0x4, fixed_abs, tag = 'smem constant byte address 0x4 - core index']
  #allocation1 [shape = 'u32[144,128]{1,0:T(1,128)}', space=vmem, size = 0x12000, scoped, tag = 'internal scratch']
  %s0 = inlined_call_operand.vmem [shape: f32[4,128], index: 0, kind: input, shape index: {}]
  %s1 = inlined_call_operand.vmem [shape: f32[4,1], index: 1, kind: input, shape index: {}]
  %s2 = inlined_call_operand.hbm [shape: f32[4,128], index: 2, kind: output, shape index: {}]
  %s3 = sld [smem:[#allocation0]]
  $region18: #{tpu_custom_call.1} parent=0
    _
  %s5 = ssub.s32 1, %s3
  %s6 = scalar_select 0, %s5, %s3
  $region1: #{tpu_custom_call.1} parent=0
    #allocation2 [shape = 'u8[4096]{0}', space=vmem, size = 0x1000, scoped, tag = 'output window, operand 0, single buffered']
    #allocation3 [shape = 's32[1]{0}', space=sflag, size = 0x4, scoped, tag = 'scoped memory for tpu_custom_call.1']
    %7 = vsyncpa [#allocation3], 0
    // Predicated region
    $region2: #{tpu_custom_call.1} parent=1 // pred_check
      _
    $region3: #{tpu_custom_call.1} parent=1 // pred_check_branch
      %9 = sbr.rel (0) target = $region5
    $region4: #{tpu_custom_call.1} parent=1 // pred_region
      _
    $region5: #{tpu_custom_call.1} parent=1 // pred_fallthru
      _
    // Predicated region
    $region6: #{tpu_custom_call.1} parent=1 // pred_check
      _
    $region7: #{tpu_custom_call.1} parent=1 // pred_check_branch
      %11 = sbr.rel (0) target = $region9
    $region8: #{tpu_custom_call.1} parent=1 // pred_region
      _
    $region9: #{tpu_custom_call.1} parent=1 // pred_fallthru
      _
    %v12 = vld [vmem:[%s0] sm:$0xff]
    %v13 = vld [vmem:[%s1] sm:$0xff]
    %15 = vset.pattern.permute.xlu0 0
    %16 = vperm.xlu0 %15, %v13
    %v17 = vpop.permute.xlu0 %16
    %v19 = vmul.f32 %v12, %v17
    %20 = vst [vmem:[#allocation2] sm:$0xff] %v19
    // Predicated region
    $region10: #{tpu_custom_call.1} parent=1 // pred_check
      _
    $region11: #{tpu_custom_call.1} parent=1 // pred_check_branch
      %22 = sbr.rel (0) target = $region13
    $region12: #{tpu_custom_call.1} parent=1 // pred_region
      %s24 = ssub.s32 128, 64
      %25 = vsyncadd [#allocation3], %s24
      %s26 = sshll.u32 [#allocation2], 4
      %s27 = int_to_ptr.vmem [resolvable:$true] %s26
      %32 = dma.vmem_to_hbm [thread:$0]  %s27, 64, %s2, [#allocation3], 64, 64, 4
    $region13: #{tpu_custom_call.1} parent=1 // pred_fallthru
      _
    // Predicated region
    $region14: #{tpu_custom_call.1} parent=1 // pred_check
      _
    $region15: #{tpu_custom_call.1} parent=1 // pred_check_branch
      %34 = sbr.rel (0) target = $region17
    $region16: #{tpu_custom_call.1} parent=1 // pred_region
      %35 = dma.done [#allocation3], 128
    $region17: #{tpu_custom_call.1} parent=1 // pred_fallthru
      _
    %36 = vsyncpa [#allocation3], 1

</llo_original>
